<compile_context>
chip_gen: v6e
topology: v6e:2x2x1
jax: 0.10.0
libtpu: 0.0.40
codegen_flags: <defaults>
</compile_context>

<pallas_src>
import functools

import jax
import jax.numpy as jnp
from jax.experimental import pallas as pl
from jax.experimental.pallas import tpu as pltpu


def _pick_bt(B, S, d_in, d_hid_p, x_itemsize, target_block_bytes=2 << 20):
    """Batch tile Bt (sequences per grid step).

    Constraints: Bt divides B and the (Bt*S, *) blocks are legal
    ((Bt*S) % 8 == 0, or Bt == B so the block covers the full array).
    Preferences: keep >= 2 grid steps (v7x megacore + pipelining) and keep the
    per-step moving-block footprint near `target_block_bytes`.
    """
    legal = [bt for bt in range(1, B + 1)
             if B % bt == 0 and ((bt * S) % 8 == 0 or bt == B)]
    pref = [bt for bt in legal if B // bt >= 2] or legal

    def step_bytes(bt):
        rows = bt * S
        # moving per step: x block + out block (pos/weights are resident).
        return rows * (d_in * x_itemsize + d_hid_p * x_itemsize)

    fit = [bt for bt in pref if step_bytes(bt) <= target_block_bytes]
    return max(fit) if fit else min(pref)


def bnt_embed_kernel(x_ref, w_ref, pos_ref, o_ref, *, seq_len):
    # x_ref:   (M, d_in)          M = Bt * seq_len rows (Bt full sequences)
    # w_ref:   (3*d_in, d_hid_p)  fused tap-major conv weight (zero-padded cols)
    # pos_ref: (M, d_hid_p)       f32, position embeddings + conv bias, tiled Bt
    # o_ref:   (M, d_hid_p)
    x = x_ref[...]                               # native dtype, no upcast
    m = x.shape[0]

    # In-sequence position of each row; blocks always start at a batch boundary.
    row = jax.lax.broadcasted_iota(jnp.int32, (m, 1), 0)
    t = row % seq_len
    zero = jnp.zeros((), x.dtype)

    # x[t-1] / x[t+1] with zero padding at sequence edges.  Rolls are cyclic
    # (shift must be non-negative); rows that leak across batch / block
    # boundaries are exactly the masked ones.
    x_prev = jnp.where(t == 0, zero, pltpu.roll(x, shift=1, axis=0))
    x_next = jnp.where(t == seq_len - 1, zero, pltpu.roll(x, shift=m - 1, axis=0))

    # One fused MXU matmul over K = 3*d_in instead of three tiny ones.
    xcat = jnp.concatenate([x_prev, x, x_next], axis=-1)        # (M, 3*d_in)
    y = jnp.dot(xcat, w_ref[...], preferred_element_type=jnp.float32)

    y = y + pos_ref[...]                         # f32 add (conv bias folded in)
    o_ref[...] = y.astype(o_ref.dtype)


@jax.jit
def bnt_embeddings(x, conv_w_taps, conv_b, pos_emb):
    """x: (B, S, d_in); conv_w_taps: (3, d_in, d_hid); conv_b: (1, d_hid);
    pos_emb: (1, S, d_hid) already sliced to the sequence length."""
    B, S, d_in = x.shape
    d_hid = conv_w_taps.shape[-1]
    elt = jnp.dtype(x.dtype).itemsize

    # Fold bias into positional embedding; pad output channels to 128 lanes.
    d_hid_p = ((d_hid + 127) // 128) * 128
    pad = d_hid_p - d_hid
    pos_b = (pos_emb + conv_b[None, :, :]).astype(jnp.float32)   # (1, S, d_hid)
    w_fused = conv_w_taps.reshape(3 * d_in, d_hid).astype(x.dtype)
    if pad:
        w_fused = jnp.pad(w_fused, ((0, 0), (0, pad)))
        pos_b = jnp.pad(pos_b, ((0, 0), (0, 0), (0, pad)))

    bt = _pick_bt(B, S, d_in, d_hid_p, elt)
    steps = B // bt
    M = bt * S

    x_flat = x.reshape(B * S, d_in)                  # contiguous: free reshape
    pos_tile = jnp.tile(pos_b[0], (bt, 1))           # (M, d_hid_p) f32, resident

    # Explicit VMEM accounting: double-buffered moving blocks + resident slabs.
    x_bytes = M * d_in * elt
    out_bytes = M * d_hid_p * elt
    pos_bytes = M * d_hid_p * 4
    w_bytes = 3 * d_in * d_hid_p * elt
    vmem_need = 2 * (x_bytes + out_bytes) + pos_bytes + w_bytes
    vmem_limit = int(min(max(vmem_need + (2 << 20), 4 << 20), 32 << 20))

    cost = pl.CostEstimate(
        flops=2 * B * S * (3 * d_in) * d_hid_p,
        transcendentals=0,
        bytes_accessed=(B * S * d_in * elt + w_bytes + pos_bytes
                        + B * S * d_hid_p * elt),
    )

    out_flat = pl.pallas_call(
        functools.partial(bnt_embed_kernel, seq_len=S),
        out_shape=jax.ShapeDtypeStruct((B * S, d_hid_p), x.dtype),
        grid=(steps,),
        in_specs=[
            pl.BlockSpec((M, d_in), lambda i: (i, 0)),
            pl.BlockSpec((3 * d_in, d_hid_p), lambda i: (0, 0)),
            pl.BlockSpec((M, d_hid_p), lambda i: (0, 0)),
        ],
        out_specs=pl.BlockSpec((M, d_hid_p), lambda i: (i, 0)),
        compiler_params=pltpu.CompilerParams(
            dimension_semantics=("parallel",),
            vmem_limit_bytes=vmem_limit),
        cost_estimate=cost,
    )(x_flat, w_fused, pos_tile)

    return out_flat[:, :d_hid].reshape(B, S, d_hid)


def reference(x, conv_w_taps, conv_b, pos_emb):
    """Pure-JAX reference of the same forward (conv1d 'same', k=3)."""
    B, S, d_in = x.shape
    zero = jnp.zeros((B, 1, d_in), x.dtype)
    x_prev = jnp.concatenate([zero, x[:, :-1, :]], axis=1)
    x_next = jnp.concatenate([x[:, 1:, :], zero], axis=1)
    y = (jnp.einsum('bsi,ih->bsh', x_prev, conv_w_taps[0])
         + jnp.einsum('bsi,ih->bsh', x, conv_w_taps[1])
         + jnp.einsum('bsi,ih->bsh', x_next, conv_w_taps[2]))
    y = y + conv_b[None, :, :]
    y = y + pos_emb
    return y


def _make_inputs(key, B, S, d_in, d_hid, max_len, dtype=jnp.float32):
    k_x, k_w, k_b, k_pos = jax.random.split(key, 4)
    x = jax.random.normal(k_x, (B, S, d_in), dtype=dtype)
    # Conv1d weight in PyTorch is (d_hid, d_in, K); store tap-major as
    # (K, d_in, d_hid) so each tap is a plain (d_in, d_hid) matmul operand.
    conv_w_torch = jax.random.normal(k_w, (d_hid, d_in, 3), dtype=dtype) * 0.1
    conv_w_taps = jnp.transpose(conv_w_torch, (2, 1, 0))        # (3, d_in, d_hid)
    conv_b = jax.random.normal(k_b, (1, d_hid), dtype=dtype) * 0.1
    pos_full = jax.random.normal(k_pos, (1, max_len, d_hid), dtype=dtype)
    pos_emb = pos_full[:, :S, :]                                # T = S (no cls)
    return x, conv_w_taps, conv_b, pos_emb


if __name__ == "__main__":
    key = jax.random.PRNGKey(0)
    k1, k2 = jax.random.split(key)

    # Small, module-consistent shapes.
    for k, (B, S, d_in, d_hid, max_len) in ((k1, (2, 8, 4, 32, 8)),
                                            (k2, (4, 16, 8, 48, 16))):
        x, conv_w_taps, conv_b, pos_emb = _make_inputs(k, B, S, d_in, d_hid,
                                                       max_len)
        out = bnt_embeddings(x, conv_w_taps, conv_b, pos_emb)
        out = jax.block_until_ready(out)

        ref = reference(x, conv_w_taps, conv_b, pos_emb)
        assert out.shape == (B, S, d_hid)
        assert jnp.allclose(out, ref, atol=1e-5, rtol=1e-5), "mismatch vs reference"

    print("KERNEL_OK")
</pallas_src>

<mosaic_0001>
module attributes {stable_mosaic.version = 11 : i64} {
  func.func @bnt_embed_kernel(%arg0: i32, %arg1: memref<8x4xf32, #tpu.memory_space<vmem>>, %arg2: memref<12x128xf32, #tpu.memory_space<vmem>>, %arg3: memref<8x128xf32, #tpu.memory_space<vmem>>, %arg4: memref<8x128xf32, #tpu.memory_space<vmem>>) attributes {dimension_semantics = [#tpu.dimension_semantics<parallel>], iteration_bounds = array<i64: 2>, scalar_prefetch = 0 : i64, scratch_operands = 0 : i64, tpu.core_type = #tpu.core_type<tc>, window_params = [{transform_indices = @transform_0, window_bounds = array<i64: 8, 4>}, {pipeline_mode = #tpu.pipeline_mode<synchronous>, transform_indices = @transform_1, window_bounds = array<i64: 12, 128>}, {pipeline_mode = #tpu.pipeline_mode<synchronous>, transform_indices = @transform_2, window_bounds = array<i64: 8, 128>}, {transform_indices = @transform_3, window_bounds = array<i64: 8, 128>}]} {
    %c0 = arith.constant 0 : index
    %c0_0 = arith.constant 0 : index
    %0 = vector.load %arg1[%c0, %c0_0] : memref<8x4xf32, #tpu.memory_space<vmem>>, vector<8x4xf32>
    %1 = tpu.iota {dimensions = array<i32: 0>} : vector<8x1xi32>
    %c8_i32 = arith.constant 8 : i32
    %c0_i32 = arith.constant 0 : i32
    %2 = arith.cmpi eq, %c8_i32, %c0_i32 : i32
    %c1_i32 = arith.constant 1 : i32
    %3 = arith.select %2, %c1_i32, %c8_i32 : i32
    %4 = vector.broadcast %3 : i32 to vector<8x1xi32>
    %5 = arith.remsi %1, %4 : vector<8x1xi32>
    %c0_i32_1 = arith.constant 0 : i32
    %6 = vector.broadcast %c0_i32_1 : i32 to vector<8x1xi32>
    %7 = arith.cmpi ne, %5, %6 : vector<8x1xi32>
    %c0_i32_2 = arith.constant 0 : i32
    %8 = vector.broadcast %c0_i32_2 : i32 to vector<8x1xi32>
    %9 = arith.cmpi slt, %5, %8 : vector<8x1xi32>
    %c0_i32_3 = arith.constant 0 : i32
    %10 = arith.cmpi slt, %3, %c0_i32_3 : i32
    %11 = vector.broadcast %10 : i1 to vector<8x1xi1>
    %12 = vector.broadcast %11 : vector<8x1xi1> to vector<8x1xi1>
    %13 = arith.xori %9, %12 : vector<8x1xi1>
    %14 = arith.andi %13, %7 : vector<8x1xi1>
    %15 = vector.broadcast %3 : i32 to vector<8x1xi32>
    %16 = arith.addi %5, %15 : vector<8x1xi32>
    %17 = arith.select %14, %16, %5 : vector<8x1xi1>, vector<8x1xi32>
    %c0_i32_4 = arith.constant 0 : i32
    %18 = vector.broadcast %c0_i32_4 : i32 to vector<8x1xi32>
    %19 = arith.cmpi eq, %17, %18 : vector<8x1xi32>
    %c1_i32_5 = arith.constant 1 : i32
    %20 = tpu.dynamic_rotate %0 by %c1_i32_5 dim 0 : vector<8x4xf32>, i32 -> vector<8x4xf32>
    %cst = arith.constant 0.000000e+00 : f32
    %21 = vector.shape_cast %19 : vector<8x1xi1> to vector<8x1xi1>
    %22 = vector.broadcast %21 : vector<8x1xi1> to vector<8x4xi1>
    %23 = vector.broadcast %cst : f32 to vector<8x4xf32>
    %24 = arith.select %22, %23, %20 : vector<8x4xi1>, vector<8x4xf32>
    %c7_i32 = arith.constant 7 : i32
    %25 = vector.broadcast %c7_i32 : i32 to vector<8x1xi32>
    %26 = arith.cmpi eq, %17, %25 : vector<8x1xi32>
    %c7_i32_6 = arith.constant 7 : i32
    %27 = tpu.dynamic_rotate %0 by %c7_i32_6 dim 0 : vector<8x4xf32>, i32 -> vector<8x4xf32>
    %cst_7 = arith.constant 0.000000e+00 : f32
    %28 = vector.shape_cast %26 : vector<8x1xi1> to vector<8x1xi1>
    %29 = vector.broadcast %28 : vector<8x1xi1> to vector<8x4xi1>
    %30 = vector.broadcast %cst_7 : f32 to vector<8x4xf32>
    %31 = arith.select %29, %30, %27 : vector<8x4xi1>, vector<8x4xf32>
    %32 = tpu.concatenate %24, %0, %31 in 1 : vector<8x4xf32>, vector<8x4xf32>, vector<8x4xf32> -> vector<8x12xf32>
    %c0_8 = arith.constant 0 : index
    %c0_9 = arith.constant 0 : index
    %33 = vector.load %arg2[%c0_8, %c0_9] : memref<12x128xf32, #tpu.memory_space<vmem>>, vector<12x128xf32>
    %cst_10 = arith.constant dense<0.000000e+00> : vector<8x128xf32>
    %34 = tpu.matmul %32, %33, %cst_10 {dimension_numbers = #tpu.dot_dimension_numbers<[1], [0], [0], [1], [0, 0, 1, 1], [], []>} : vector<8x12xf32>, vector<12x128xf32>, vector<8x128xf32> -> vector<8x128xf32>
    %c0_11 = arith.constant 0 : index
    %c0_12 = arith.constant 0 : index
    %35 = vector.load %arg3[%c0_11, %c0_12] : memref<8x128xf32, #tpu.memory_space<vmem>>, vector<8x128xf32>
    %36 = arith.addf %34, %35 : vector<8x128xf32>
    %c0_13 = arith.constant 0 : index
    %c0_14 = arith.constant 0 : index
    %37 = vector.load %arg4[%c0_13, %c0_14] : memref<8x128xf32, #tpu.memory_space<vmem>>, vector<8x128xf32>
    tpu.vector_store %arg4[%c0_13, %c0_14], %36 {strides = array<i32>} : memref<8x128xf32, #tpu.memory_space<vmem>>, vector<8x128xf32>,
    return
  }
  func.func @transform_0(%arg0: i32) -> (i32, i32) {
    %c0_i32 = arith.constant 0 : i32
    %c0_i32_0 = arith.constant 0 : i32
    return %arg0, %c0_i32 : i32, i32
  }
  func.func @transform_1(%arg0: i32) -> (i32, i32) {
    %c0_i32 = arith.constant 0 : i32
    %c0_i32_0 = arith.constant 0 : i32
    %c0_i32_1 = arith.constant 0 : i32
    return %c0_i32, %c0_i32_0 : i32, i32
  }
  func.func @transform_2(%arg0: i32) -> (i32, i32) {
    %c0_i32 = arith.constant 0 : i32
    %c0_i32_0 = arith.constant 0 : i32
    %c0_i32_1 = arith.constant 0 : i32
    return %c0_i32, %c0_i32_0 : i32, i32
  }
  func.func @transform_3(%arg0: i32) -> (i32, i32) {
    %c0_i32 = arith.constant 0 : i32
    %c0_i32_0 = arith.constant 0 : i32
    return %arg0, %c0_i32 : i32, i32
  }
}

</mosaic_0001>

<llo_original>
// kernel: bnt_embeddings.1
$region0: #{bnt_embeddings.1}
  #allocation0 [shape = 'u32[]', space=smem, size = 0x4, offset = 0x4, fixed_abs, tag = 'smem constant byte address 0x4 - core index']
  #allocation1 [shape = 'u32[144,128]{1,0:T(1,128)}', space=vmem, size = 0x12000, scoped, tag = 'internal scratch']
  %s0 = inlined_call_operand.vmem [shape: f32[16,4], index: 0, kind: input, shape index: {}]
  %s1 = inlined_call_operand.vmem [shape: f32[12,128], index: 1, kind: input, shape index: {}]
  %s2 = inlined_call_operand.vmem [shape: f32[8,128], index: 2, kind: input, shape index: {}]
  %s3 = inlined_call_operand.vmem [shape: f32[16,128], index: 3, kind: output, shape index: {}]
  %s4 = sld [smem:[#allocation0]]
  $region45: #{bnt_embeddings.1} parent=0
    _
  %s6 = ssub.s32 1, %s4
  %s7 = scalar_select 0, %s6, %s4
  loop: start=0, step=1, limit=4
  $region2: #{bnt_embeddings.1} parent=0 // loop_pre_header
    _
  $region3: #{bnt_embeddings.1} parent=0 // loop_header
    %s9 = sphi 0, %s13
    %p10 = scmp.ge.s32.totalorder %s9, 4
    %s19 = sphi 0, %s21
    %s22 = sphi 0, %s19
    %s23 = sphi 0, %s22
    %s39 = sphi 0, %s23
    %s43 = sphi 0, %s43
    %s45 = sphi 0, %s43
    %s46 = sphi 0, %s45
    %s60 = sphi 0, %s46
    %s64 = sphi 0, %s64
    %s66 = sphi 0, %s64
    %s67 = sphi 0, %s66
    %s81 = sphi 0, %s67
    %s87 = sphi 0, %s89
    %s90 = sphi 0, %s87
    %s91 = sphi 0, %s90
    %s107 = sphi 0, %s91
  $region4: #{bnt_embeddings.1} parent=0 // loop_header_branch
    %12 = sbr.rel (%p10) target = $region8
  $region5: #{bnt_embeddings.1} parent=0 // loop_body
    %s14 = ssub.s32 %s9, 1
    %s15 = ssub.s32 %s9, 2
    %s16 = sadd.s32 %s9, 1
    %s17 = ssub.s32 %s9, %s16
    %p18 = scmp.eq.s32.totalorder %s17, 0
    %s20 = sadd.s32 %s19, 1
    %s21 = scalar_select %p18, %s19, %s20
    %p24 = pneg %p18
    %p25 = scmp.eq.s32.totalorder %s9, 1
    %p26 = por %p24, %p25
    %p27 = scmp.ne.s32.totalorder %s19, %s22
    %p28 = scmp.eq.s32.totalorder %s9, 0
    %p29 = por %p27, %p28
    %p30 = scmp.ne.s32.totalorder %s19, %s22
    %p31 = scmp.eq.s32.totalorder %s14, 1
    %p32 = por %p30, %p31
    %p33 = scmp.ne.s32.totalorder %s22, %s23
    %p34 = scmp.eq.s32.totalorder %s14, 0
    %p35 = por %p33, %p34
    %p36 = scmp.ne.s32.totalorder %s22, %s23
    %p37 = scmp.eq.s32.totalorder %s15, 1
    %p38 = por %p36, %p37
    %p40 = scmp.ne.s32.totalorder %s23, %s39
    %p41 = scmp.eq.s32.totalorder %s15, 0
    %p42 = por %p40, %p41
    %s44 = sadd.s32 %s43, 1
    %p47 = scmp.eq.s32.totalorder %s9, 1
    %p48 = scmp.ne.s32.totalorder %s43, %s45
    %p49 = scmp.eq.s32.totalorder %s9, 0
    %p50 = por %p48, %p49
    %p51 = scmp.ne.s32.totalorder %s43, %s45
    %p52 = scmp.eq.s32.totalorder %s14, 1
    %p53 = por %p51, %p52
    %p54 = scmp.ne.s32.totalorder %s45, %s46
    %p55 = scmp.eq.s32.totalorder %s14, 0
    %p56 = por %p54, %p55
    %p57 = scmp.ne.s32.totalorder %s45, %s46
    %p58 = scmp.eq.s32.totalorder %s15, 1
    %p59 = por %p57, %p58
    %p61 = scmp.ne.s32.totalorder %s46, %s60
    %p62 = scmp.eq.s32.totalorder %s15, 0
    %p63 = por %p61, %p62
    %s65 = sadd.s32 %s64, 1
    %p68 = scmp.eq.s32.totalorder %s9, 1
    %p69 = scmp.ne.s32.totalorder %s64, %s66
    %p70 = scmp.eq.s32.totalorder %s9, 0
    %p71 = por %p69, %p70
    %p72 = scmp.ne.s32.totalorder %s64, %s66
    %p73 = scmp.eq.s32.totalorder %s14, 1
    %p74 = por %p72, %p73
    %p75 = scmp.ne.s32.totalorder %s66, %s67
    %p76 = scmp.eq.s32.totalorder %s14, 0
    %p77 = por %p75, %p76
    %p78 = scmp.ne.s32.totalorder %s66, %s67
    %p79 = scmp.eq.s32.totalorder %s15, 1
    %p80 = por %p78, %p79
    %p82 = scmp.ne.s32.totalorder %s67, %s81
    %p83 = scmp.eq.s32.totalorder %s15, 0
    %p84 = por %p82, %p83
    %s85 = ssub.s32 %s9, %s16
    %p86 = scmp.eq.s32.totalorder %s85, 0
    %s88 = sadd.s32 %s87, 1
    %s89 = scalar_select %p86, %s87, %s88
    %p92 = pneg %p86
    %p93 = scmp.eq.s32.totalorder %s9, 1
    %p94 = por %p92, %p93
    %p95 = scmp.ne.s32.totalorder %s87, %s90
    %p96 = scmp.eq.s32.totalorder %s9, 0
    %p97 = por %p95, %p96
    %p98 = scmp.ne.s32.totalorder %s87, %s90
    %p99 = scmp.eq.s32.totalorder %s14, 1
    %p100 = por %p98, %p99
    %p101 = scmp.ne.s32.totalorder %s90, %s91
    %p102 = scmp.eq.s32.totalorder %s14, 0
    %p103 = por %p101, %p102
    %p104 = scmp.ne.s32.totalorder %s90, %s91
    %p105 = scmp.eq.s32.totalorder %s15, 1
    %p106 = por %p104, %p105
    %p108 = scmp.ne.s32.totalorder %s91, %s107
    %p109 = scmp.eq.s32.totalorder %s15, 0
    %p110 = por %p108, %p109
    %p111 = scmp.le.s32.totalorder 1, %s9
    %p112 = scmp.lt.s32.totalorder %s9, 3
    %p113 = pnand %p111, %p112
    %p114 = pneg %p113
    // Predicated region
    $region9: #{bnt_embeddings.1} parent=5 // pred_check
      _
    $region10: #{bnt_embeddings.1} parent=5 // pred_check_branch
      %116 = sbr.rel (%p113) target = $region12
    $region11: #{bnt_embeddings.1} parent=5 // pred_region
      %s117 = ssub.s32 %s9, 1
      // Predicated region
      $region13: #{bnt_embeddings.1} parent=11 // pred_check
        %p118 = pneg %p56
      $region14: #{bnt_embeddings.1} parent=11 // pred_check_branch
        %120 = sbr.rel (%p118) target = $region16
      $region15: #{bnt_embeddings.1} parent=11 // pred_region
        _
      $region16: #{bnt_embeddings.1} parent=11 // pred_fallthru
        _
      // Predicated region
      $region17: #{bnt_embeddings.1} parent=11 // pred_check
        %p121 = pneg %p77
      $region18: #{bnt_embeddings.1} parent=11 // pred_check_branch
        %123 = sbr.rel (%p121) target = $region20
      $region19: #{bnt_embeddings.1} parent=11 // pred_region
        _
      $region20: #{bnt_embeddings.1} parent=11 // pred_fallthru
        _
    $region12: #{bnt_embeddings.1} parent=5 // pred_fallthru
      _
    %p124 = scmp.lt.s32.totalorder %s9, 2
    // Predicated region
    $region21: #{bnt_embeddings.1} parent=5 // pred_check
      %p125 = pneg %p124
    $region22: #{bnt_embeddings.1} parent=5 // pred_check_branch
      %127 = sbr.rel (%p125) target = $region24
    $region23: #{bnt_embeddings.1} parent=5 // pred_region
      // Predicated region
      $region25: #{bnt_embeddings.1} parent=23 // pred_check
        %p128 = pneg %p29
      $region26: #{bnt_embeddings.1} parent=23 // pred_check_branch
        %130 = sbr.rel (%p128) target = $region28
      $region27: #{bnt_embeddings.1} parent=23 // pred_region
        %p131 = scmp.lt.s32.totalorder %s9, 1
        %s132 = scalar_select %p131, %s9, 1
        %s133 = smul.addr %s132, 8
        %s134 = scalar_lea.vmem %s0, %s133
      $region28: #{bnt_embeddings.1} parent=23 // pred_fallthru
        _
    $region24: #{bnt_embeddings.1} parent=5 // pred_fallthru
      _
    %p135 = scmp.le.s32.totalorder 1, %s9
    %p136 = scmp.lt.s32.totalorder %s9, 3
    %p137 = pnand %p135, %p136
    %p138 = pneg %p137
    // Predicated region
    $region29: #{bnt_embeddings.1} parent=5 // pred_check
      _
    $region30: #{bnt_embeddings.1} parent=5 // pred_check_branch
      %140 = sbr.rel (%p137) target = $region32
    $region31: #{bnt_embeddings.1} parent=5 // pred_region
      %s141 = ssub.s32 %s9, 1
      %p142 = scmp.lt.s32.totalorder %s14, 1
      %s143 = scalar_select %p142, %s14, 1
      %s144 = smul.addr %s143, 8
      %s145 = scalar_lea.vmem %s0, %s144
      %p146 = pneg %p35
      %p147 = pneg %p32
      %p148 = pneg %p56
      %p149 = pneg %p53
      %p150 = pneg %p77
      %p151 = pneg %p74
      %p152 = pneg %p103
      %p153 = pneg %p100
      %p154 = scmp.lt.s32.totalorder %s14, 1
      %s155 = scalar_select %p154, %s14, 1
      %s156 = smul.addr %s155, 8
      %s157 = scalar_lea.vmem %s3, %s156
      %p158 = scmp.lt.s32.totalorder %s14, 1
      %s159 = scalar_select %p158, %s14, 1
      %s160 = smul.addr %s159, 8
      %s161 = scalar_lea.vmem %s0, %s160
      %p162 = scmp.lt.s32.totalorder %s14, 1
      %s163 = scalar_select %p162, %s14, 1
      %s164 = smul.addr %s163, 8
      %s165 = scalar_lea.vmem %s3, %s164
      %v166 = vld [vmem:[%s161] sm:$0xff]
      %v167 = vlaneseq
      %v168 = vshrl.u32 %v167, 7
      %vm169 = vcmp.lt.s32.totalorder %v168, 0
      %v170 = vsub.s32 0, %v168
      %v171 = vsel %vm169, %v170, %v168
      %v172 = vshrl.u32 %v171, 3
      %v173 = vand.u32 %v171, 7
      %v174 = vsub.s32 0, %v173
      %v175 = vsel %vm169, %v174, %v173
      %vm176 = vcmp.ne.s32.totalorder %v175, 0
      %vm177 = vcmp.lt.s32.totalorder %v175, 0
      %vm178 = vmand %vm177, %vm176
      %v179 = vadd.s32 %v175, 8
      %v180 = vsel %vm178, %v179, %v175
      %vm181 = vcmp.eq.s32.totalorder %v180, 0
      %v182 = vrot.slane %v166, 7
      %v183 = vsel %vm181, 1, 0
      %vm184 = vcmp.eq.s32.totalorder %v183, 1
      %v185 = vsel %vm184, 0.0, %v182
      %vm186 = vcmp.eq.s32.totalorder %v180, 7
      %v187 = vrot.slane %v166, 1
      %v188 = vsel %vm186, 1, 0
      %vm189 = vcmp.eq.s32.totalorder %v188, 1
      %v190 = vsel %vm189, 0.0, %v187
      %192 = vrot.lane.b32.xlu0 %v166, 4
      %v193 = vpop.permute.xlu0 %192
      %196 = vrot.lane.b32.xlu0 %v190, 8
      %v197 = vpop.permute.xlu0 %196
      %vm199 = vcmask 31744
      %v200 = vsel %vm199, %v185, %v193
      %vm201 = vcmask 64512
      %v202 = vsel %vm201, %v200, %v197
      %v203 = vld [vmem:[%s1] sm:$0xff]
      %v204 = vld [vmem:[%s1 + $0x8] sm:$0xf]
      %v205 = vld [vmem:[%s2] sm:$0xff]
      %vm206 = vcmask 97280
      %v208 = vsel %vm206, %v202, 0
      %vm210 = vcmask 1043456
      %v212 = vsel %vm210, %v204, 0
      %214 = vmatprep.subr.mxu0 0.0
      %215 = vmatpush1.msra.mxu0 0.0
      %216 = vmatprep.subr.mxu0 0.0
      %217 = vmatpush1.msra.mxu0 0.0
      %218 = vmatprep.subr.mxu0 0.0
      %219 = vmatpush1.msra.mxu0 0.0
      %220 = vmatprep.subr.mxu0 0.0
      %221 = vmatpush1.msra.mxu0 0.0
      %222 = vmatprep.subr.mxu0 0.0
      %223 = vmatpush1.msra.mxu0 0.0
      %224 = vmatprep.subr.mxu0 0.0
      %225 = vmatpush1.msra.mxu0 0.0
      %226 = vmatprep.subr.mxu0 0.0
      %227 = vmatpush1.msra.mxu0 0.0
      %228 = vmatprep.subr.mxu0 0.0
      %229 = vmatpush1.msra.mxu0 0.0
      %230 = vmatprep.subr.mxu0 0.0
      %231 = vmatpush1.msra.mxu0 0.0
      %232 = vmatprep.subr.mxu0 0.0
      %233 = vmatpush1.msra.mxu0 0.0
      %234 = vmatprep.subr.mxu0 0.0
      %235 = vmatpush1.msra.mxu0 0.0
      %236 = vmatprep.subr.mxu0 0.0
      %237 = vmatpush1.msra.mxu0 0.0
      %238 = vmatprep.subr.mxu0 0.0
      %239 = vmatpush1.msra.mxu0 0.0
      %240 = vmatprep.subr.mxu0 0.0
      %241 = vmatpush1.msra.mxu0 0.0
      %242 = vmatprep.subr.mxu0 0.0
      %243 = vmatpush1.msra.mxu0 %v212
      %244 = vmatprep.subr.mxu0 0.0
      %245 = vmatpush1.msra.mxu0 %v203
      %246 = vmatprep.subr.mxu0 0.0
      %247 = vmatpush2.msra.mxu0 0.0
      %248 = vmatprep.subr.mxu0 0.0
      %249 = vmatpush2.msra.mxu0 0.0
      %250 = vmatprep.subr.mxu0 0.0
      %251 = vmatpush2.msra.mxu0 0.0
      %252 = vmatprep.subr.mxu0 0.0
      %253 = vmatpush2.msra.mxu0 0.0
      %254 = vmatprep.subr.mxu0 0.0
      %255 = vmatpush2.msra.mxu0 0.0
      %256 = vmatprep.subr.mxu0 0.0
      %257 = vmatpush2.msra.mxu0 0.0
      %258 = vmatprep.subr.mxu0 0.0
      %259 = vmatpush2.msra.mxu0 0.0
      %260 = vmatprep.subr.mxu0 0.0
      %261 = vmatpush2.msra.mxu0 0.0
      %262 = vmatprep.subr.mxu0 0.0
      %263 = vmatpush2.msra.mxu0 0.0
      %264 = vmatprep.subr.mxu0 0.0
      %265 = vmatpush2.msra.mxu0 0.0
      %266 = vmatprep.subr.mxu0 0.0
      %267 = vmatpush2.msra.mxu0 0.0
      %268 = vmatprep.subr.mxu0 0.0
      %269 = vmatpush2.msra.mxu0 0.0
      %270 = vmatprep.subr.mxu0 0.0
      %271 = vmatpush2.msra.mxu0 0.0
      %272 = vmatprep.subr.mxu0 0.0
      %273 = vmatpush2.msra.mxu0 0.0
      %274 = vmatprep.subr.mxu0 0.0
      %275 = vmatpush2.msra.mxu0 0.0
      %276 = vmatprep.subr.mxu0 0.0
      %277 = vmatpush2.msra.mxu0 0.0
      %278 = vmatprep.mubr.f32.mxu0 0.0
      %279 = vmatmul.mubr.f32.gmra.mxu0 %v208
      %v280 = vpop.f32.mrf.mxu0
      %v281 = vadd.f32 %v205, %v280
      %v282 = vpop.f32.mrf.mxu0
      %283 = vdwg.mxu0
      %284 = vst [vmem:[%s165] sm:$0xff] %v281
      %p285 = scmp.lt.s32.totalorder %s14, 1
      %s286 = scalar_select %p285, %s14, 1
      %s287 = smul.addr %s286, 8
      %s288 = scalar_lea.vmem %s3, %s287
      // Predicated region
      $region33: #{bnt_embeddings.1} parent=31 // pred_check
        %p289 = pneg %p100
      $region34: #{bnt_embeddings.1} parent=31 // pred_check_branch
        %291 = sbr.rel (%p289) target = $region36
      $region35: #{bnt_embeddings.1} parent=31 // pred_region
        _
      $region36: #{bnt_embeddings.1} parent=31 // pred_fallthru
        _
    $region32: #{bnt_embeddings.1} parent=5 // pred_fallthru
      _
    %p292 = scmp.le.s32.totalorder 2, %s9
    // Predicated region
    $region37: #{bnt_embeddings.1} parent=5 // pred_check
      %p293 = pneg %p292
    $region38: #{bnt_embeddings.1} parent=5 // pred_check_branch
      %295 = sbr.rel (%p293) target = $region40
    $region39: #{bnt_embeddings.1} parent=5 // pred_region
      %s296 = ssub.s32 %s9, 2
      // Predicated region
      $region41: #{bnt_embeddings.1} parent=39 // pred_check
        %p297 = pneg %p106
      $region42: #{bnt_embeddings.1} parent=39 // pred_check_branch
        %299 = sbr.rel (%p297) target = $region44
      $region43: #{bnt_embeddings.1} parent=39 // pred_region
        %p300 = scmp.lt.s32.totalorder %s15, 1
        %s301 = scalar_select %p300, %s15, 1
        %s302 = smul.addr %s301, 8
        %s303 = scalar_lea.vmem %s3, %s302
      $region44: #{bnt_embeddings.1} parent=39 // pred_fallthru
        _
    $region40: #{bnt_embeddings.1} parent=5 // pred_fallthru
      _
  $region6: #{bnt_embeddings.1} parent=0 // loop_footer
    %s13 = sadd.s32 1, %s9
  $region7: #{bnt_embeddings.1} parent=0 // loop_footer_branch
    %8 = sbr.rel target = $region3
  $region8: #{bnt_embeddings.1} parent=0 // loop_exit
    _

</llo_original>
